<compile_context>
chip_gen: v6e
topology: v6e:2x2x1
jax: 0.10.0
libtpu: 0.0.40
codegen_flags: <defaults>
</compile_context>

<pallas_src>
import math

import jax
import jax.numpy as jnp
from jax.experimental import pallas as pl
from jax.experimental.pallas import tpu as pltpu


# ---------------------------------------------------------------------------
# Pallas kernels
# ---------------------------------------------------------------------------
def _mlp_dueling_kernel(x_ref, w1_ref, b1_ref, w2_ref, b2_ref,
                        wh_ref, bh_ref, out_ref):
    """Dueling head: wh = [Wq | Ws] packed -> single head matmul."""
    out_dim = out_ref.shape[-1]
    cdt = w1_ref.dtype                       # matmul operand dtype (f32 / bf16)

    x = x_ref[...].astype(cdt)                                   # [TB, in_dim]
    h1 = jnp.tanh(jnp.dot(x, w1_ref[...],
                          preferred_element_type=jnp.float32)
                  + b1_ref[...])                                 # [TB, 64] f32
    h2 = jnp.tanh(jnp.dot(h1.astype(cdt), w2_ref[...],
                          preferred_element_type=jnp.float32)
                  + b2_ref[...])                                 # [TB, 64] f32
    head = jnp.dot(h2.astype(cdt), wh_ref[...],
                   preferred_element_type=jnp.float32) + bh_ref[...]
    q = head[:, :out_dim]                                        # [TB, out_dim]
    s = head[:, out_dim:out_dim + 1]                             # [TB, 1]
    q_mean = jnp.sum(q, axis=1, keepdims=True) * (1.0 / out_dim)  # recip-mul
    out_ref[...] = (s + q - q_mean).astype(out_ref.dtype)


def _mlp_kernel(x_ref, w1_ref, b1_ref, w2_ref, b2_ref,
                wq_ref, bq_ref, out_ref):
    cdt = w1_ref.dtype
    x = x_ref[...].astype(cdt)
    h1 = jnp.tanh(jnp.dot(x, w1_ref[...],
                          preferred_element_type=jnp.float32) + b1_ref[...])
    h2 = jnp.tanh(jnp.dot(h1.astype(cdt), w2_ref[...],
                          preferred_element_type=jnp.float32) + b2_ref[...])
    q = jnp.dot(h2.astype(cdt), wq_ref[...],
                preferred_element_type=jnp.float32) + bq_ref[...]
    out_ref[...] = q.astype(out_ref.dtype)


# ---------------------------------------------------------------------------
# Tiling / VMEM helpers
# ---------------------------------------------------------------------------
def _vmem_budget_bytes():
    """~75% of per-core VMEM; conservative 64 MiB fallback (v7x-sized)."""
    try:
        cap = int(pltpu.get_tpu_info().vmem_capacity_bytes)
    except Exception:
        cap = 64 << 20
    return min(int(cap * 0.75), 96 << 20)


def _choose_batch_tile(in_dim, head_dim, x_itemsize, budget):
    def tile_bytes(tb):
        return (2 * tb * in_dim * x_itemsize      # double-buffered x tiles
                + 2 * tb * head_dim * 4           # double-buffered out tiles
                + 8 * tb * 64 * 4)                # f32 activation headroom
    tb = 512
    while tb > 8 and tile_bytes(tb) > budget // 2:
        tb //= 2
    return tb


# ---------------------------------------------------------------------------
# Wrapper
# ---------------------------------------------------------------------------
def mlp_forward(x, params, *, dueling, compute_dtype=jnp.float32,
                batch_tile=None):
    """x: [B, C, H, W] (or any [B, ...]); params: dict of weights/biases.

    compute_dtype: dtype fed to the MXU (f32 or bf16). Elementwise math and
    accumulation stay f32.
    """
    B = x.shape[0]
    x_flat = x.reshape(B, -1)                 # no astype: DMA native dtype
    in_dim = x_flat.shape[1]
    out_dim = params["wq"].shape[1]

    # Matmul operands in compute_dtype; biases stay f32 (VPU/EUP path).
    w1 = params["w1"].astype(compute_dtype)
    w2 = params["w2"].astype(compute_dtype)
    b1 = params["b1"].astype(jnp.float32)
    b2 = params["b2"].astype(jnp.float32)
    if dueling:
        w_head = jnp.concatenate([params["wq"], params["ws"]],
                                 axis=1).astype(compute_dtype)
        b_head = jnp.concatenate([params["bq"], params["bs"]],
                                 axis=1).astype(jnp.float32)
        kernel = _mlp_dueling_kernel
    else:
        w_head = params["wq"].astype(compute_dtype)
        b_head = params["bq"].astype(jnp.float32)
        kernel = _mlp_kernel
    head_dim = w_head.shape[1]

    vmem_budget = _vmem_budget_bytes()
    if batch_tile is None:
        batch_tile = _choose_batch_tile(in_dim, head_dim,
                                        x_flat.dtype.itemsize, vmem_budget)

    if B <= batch_tile:
        tb, b_pad = B, B                      # single block == full array
    else:
        tb = batch_tile
        b_pad = ((B + tb - 1) // tb) * tb
    if b_pad != B:
        x_flat = jnp.pad(x_flat, ((0, b_pad - B), (0, 0)))
    grid = (b_pad // tb,)

    x_map = lambda i: (i, 0)                  # batch-tiled
    rep_map = lambda i: (0, 0)                # resident across the grid

    weights = (w1, b1, w2, b2, w_head, b_head)
    in_specs = [pl.BlockSpec((tb, in_dim), x_map)]
    in_specs += [pl.BlockSpec(w.shape, rep_map) for w in weights]
    out_specs = pl.BlockSpec((tb, out_dim), x_map)

    flops = 2 * b_pad * (in_dim * 64 + 64 * 64 + 64 * head_dim)
    bytes_accessed = (x_flat.size * x_flat.dtype.itemsize
                      + sum(int(w.size) * w.dtype.itemsize for w in weights)
                      + b_pad * out_dim * 4)
    cost = pl.CostEstimate(flops=flops,
                           transcendentals=2 * b_pad * 64,
                           bytes_accessed=bytes_accessed)

    out = pl.pallas_call(
        kernel,
        grid=grid,
        in_specs=in_specs,
        out_specs=out_specs,
        out_shape=jax.ShapeDtypeStruct((b_pad, out_dim), jnp.float32),
        compiler_params=pltpu.CompilerParams(
            dimension_semantics=("parallel",),
            vmem_limit_bytes=vmem_budget),
        cost_estimate=cost,
    )(x_flat, *weights)
    return out[:B]


# ---------------------------------------------------------------------------
# Deterministic parameter init (xavier_uniform_ gain=1, zero bias)
# ---------------------------------------------------------------------------
def _xavier_uniform(key, fan_in, fan_out):
    bound = math.sqrt(6.0 / (fan_in + fan_out))
    # stored as [in, out] so the kernel computes x @ W (== torch's x @ W.T)
    return jax.random.uniform(key, (fan_in, fan_out), jnp.float32,
                              minval=-bound, maxval=bound)


def init_mlp_params(key, in_dim, out_dim, dueling):
    k1, k2, k3, k4 = jax.random.split(key, 4)
    params = {
        "w1": _xavier_uniform(k1, in_dim, 64),
        "b1": jnp.zeros((1, 64), jnp.float32),
        "w2": _xavier_uniform(k2, 64, 64),
        "b2": jnp.zeros((1, 64), jnp.float32),
        "wq": _xavier_uniform(k3, 64, out_dim),
        "bq": jnp.zeros((1, out_dim), jnp.float32),
    }
    if dueling:
        params["ws"] = _xavier_uniform(k4, 64, 1)
        params["bs"] = jnp.zeros((1, 1), jnp.float32)
    return params


# ---------------------------------------------------------------------------
# Pure-JAX reference for sanity checks
# ---------------------------------------------------------------------------
def mlp_reference(x, params, *, dueling):
    B = x.shape[0]
    xf = x.reshape(B, -1).astype(jnp.float32)
    h1 = jnp.tanh(xf @ params["w1"] + params["b1"])
    h2 = jnp.tanh(h1 @ params["w2"] + params["b2"])
    q = h2 @ params["wq"] + params["bq"]
    if dueling:
        s = h2 @ params["ws"] + params["bs"]
        q = s + q - q.mean(axis=1, keepdims=True)
    return q


if __name__ == "__main__":
    key = jax.random.PRNGKey(0)
    kx1, kx2, kp1, kp2 = jax.random.split(key, 4)

    # ---- Test 1: small dueling net, f32 operands, single-block grid --------
    B, C, H, W = 2, 4, 4, 4
    in_dim, out_dim = C * H * W, 8
    x = jax.random.normal(kx1, (B, C, H, W), jnp.float32)
    params = init_mlp_params(kp1, in_dim, out_dim, dueling=True)

    out = jax.block_until_ready(mlp_forward(x, params, dueling=True))
    ref = mlp_reference(x, params, dueling=True)
    assert out.shape == (B, out_dim)
    assert jnp.allclose(out, ref, atol=1e-5, rtol=1e-5), "dueling f32 mismatch"

    # ---- Test 2: non-dueling head, f32 --------------------------------------
    out_nd = jax.block_until_ready(mlp_forward(x, params, dueling=False))
    ref_nd = mlp_reference(x, params, dueling=False)
    assert jnp.allclose(out_nd, ref_nd, atol=1e-5, rtol=1e-5), "plain mismatch"

    # ---- Test 3: ragged batch, bf16 matmul operands, multi-block grid -------
    B2, C2, H2, W2 = 200, 4, 4, 4
    in_dim2, out_dim2 = C2 * H2 * W2, 6
    x2 = jax.random.normal(kx2, (B2, C2, H2, W2), jnp.float32)
    params2 = init_mlp_params(kp2, in_dim2, out_dim2, dueling=True)

    out2 = jax.block_until_ready(
        mlp_forward(x2, params2, dueling=True,
                    compute_dtype=jnp.bfloat16, batch_tile=64))
    ref2 = mlp_reference(x2, params2, dueling=True)
    assert out2.shape == (B2, out_dim2)
    assert jnp.allclose(out2, ref2, atol=5e-2, rtol=5e-2), "bf16 tiled mismatch"

    print("KERNEL_OK")
</pallas_src>

<mosaic_0001>
module attributes {stable_mosaic.version = 11 : i64} {
  func.func @_mlp_dueling_kernel(%arg0: i32, %arg1: memref<2x64xf32, #tpu.memory_space<vmem>>, %arg2: memref<64x64xf32, #tpu.memory_space<vmem>>, %arg3: memref<1x64xf32, #tpu.memory_space<vmem>>, %arg4: memref<64x64xf32, #tpu.memory_space<vmem>>, %arg5: memref<1x64xf32, #tpu.memory_space<vmem>>, %arg6: memref<64x9xf32, #tpu.memory_space<vmem>>, %arg7: memref<1x9xf32, #tpu.memory_space<vmem>>, %arg8: memref<2x8xf32, #tpu.memory_space<vmem>>) attributes {dimension_semantics = [#tpu.dimension_semantics<parallel>], iteration_bounds = array<i64: 1>, scalar_prefetch = 0 : i64, scratch_operands = 0 : i64, tpu.core_type = #tpu.core_type<tc>, window_params = [{transform_indices = @transform_0, window_bounds = array<i64: 2, 64>}, {pipeline_mode = #tpu.pipeline_mode<synchronous>, transform_indices = @transform_1, window_bounds = array<i64: 64, 64>}, {pipeline_mode = #tpu.pipeline_mode<synchronous>, transform_indices = @transform_2, window_bounds = array<i64: 1, 64>}, {pipeline_mode = #tpu.pipeline_mode<synchronous>, transform_indices = @transform_3, window_bounds = array<i64: 64, 64>}, {pipeline_mode = #tpu.pipeline_mode<synchronous>, transform_indices = @transform_4, window_bounds = array<i64: 1, 64>}, {pipeline_mode = #tpu.pipeline_mode<synchronous>, transform_indices = @transform_5, window_bounds = array<i64: 64, 9>}, {pipeline_mode = #tpu.pipeline_mode<synchronous>, transform_indices = @transform_6, window_bounds = array<i64: 1, 9>}, {transform_indices = @transform_7, window_bounds = array<i64: 2, 8>}]} {
    %c0 = arith.constant 0 : index
    %c0_0 = arith.constant 0 : index
    %0 = vector.load %arg1[%c0, %c0_0] : memref<2x64xf32, #tpu.memory_space<vmem>>, vector<2x64xf32>
    %c0_1 = arith.constant 0 : index
    %c0_2 = arith.constant 0 : index
    %1 = vector.load %arg2[%c0_1, %c0_2] : memref<64x64xf32, #tpu.memory_space<vmem>>, vector<64x64xf32>
    %cst = arith.constant dense<0.000000e+00> : vector<2x64xf32>
    %2 = tpu.matmul %0, %1, %cst {dimension_numbers = #tpu.dot_dimension_numbers<[1], [0], [0], [1], [0, 0, 1, 1], [], []>} : vector<2x64xf32>, vector<64x64xf32>, vector<2x64xf32> -> vector<2x64xf32>
    %c0_3 = arith.constant 0 : index
    %c0_4 = arith.constant 0 : index
    %3 = vector.load %arg3[%c0_3, %c0_4] : memref<1x64xf32, #tpu.memory_space<vmem>>, vector<1x64xf32>
    %4 = vector.broadcast %3 : vector<1x64xf32> to vector<2x64xf32>
    %5 = arith.addf %2, %4 : vector<2x64xf32>
    %6 = math.tanh %5 : vector<2x64xf32>
    %c0_5 = arith.constant 0 : index
    %c0_6 = arith.constant 0 : index
    %7 = vector.load %arg4[%c0_5, %c0_6] : memref<64x64xf32, #tpu.memory_space<vmem>>, vector<64x64xf32>
    %cst_7 = arith.constant dense<0.000000e+00> : vector<2x64xf32>
    %8 = tpu.matmul %6, %7, %cst_7 {dimension_numbers = #tpu.dot_dimension_numbers<[1], [0], [0], [1], [0, 0, 1, 1], [], []>} : vector<2x64xf32>, vector<64x64xf32>, vector<2x64xf32> -> vector<2x64xf32>
    %c0_8 = arith.constant 0 : index
    %c0_9 = arith.constant 0 : index
    %9 = vector.load %arg5[%c0_8, %c0_9] : memref<1x64xf32, #tpu.memory_space<vmem>>, vector<1x64xf32>
    %10 = vector.broadcast %9 : vector<1x64xf32> to vector<2x64xf32>
    %11 = arith.addf %8, %10 : vector<2x64xf32>
    %12 = math.tanh %11 : vector<2x64xf32>
    %c0_10 = arith.constant 0 : index
    %c0_11 = arith.constant 0 : index
    %13 = vector.load %arg6[%c0_10, %c0_11] : memref<64x9xf32, #tpu.memory_space<vmem>>, vector<64x9xf32>
    %cst_12 = arith.constant dense<0.000000e+00> : vector<2x9xf32>
    %14 = tpu.matmul %12, %13, %cst_12 {dimension_numbers = #tpu.dot_dimension_numbers<[1], [0], [0], [1], [0, 0, 1, 1], [], []>} : vector<2x64xf32>, vector<64x9xf32>, vector<2x9xf32> -> vector<2x9xf32>
    %c0_13 = arith.constant 0 : index
    %c0_14 = arith.constant 0 : index
    %15 = vector.load %arg7[%c0_13, %c0_14] : memref<1x9xf32, #tpu.memory_space<vmem>>, vector<1x9xf32>
    %16 = vector.broadcast %15 : vector<1x9xf32> to vector<2x9xf32>
    %17 = arith.addf %14, %16 : vector<2x9xf32>
    %18 = vector.extract_strided_slice %17 {offsets = [0, 0], sizes = [2, 8], strides = [1, 1]} : vector<2x9xf32> to vector<2x8xf32>
    %19 = vector.extract_strided_slice %17 {offsets = [0, 8], sizes = [2, 1], strides = [1, 1]} : vector<2x9xf32> to vector<2x1xf32>
    %cst_15 = arith.constant dense<0.000000e+00> : vector<2xf32>
    %20 = vector.multi_reduction <add>, %18, %cst_15 [1] : vector<2x8xf32> to vector<2xf32>
    %21 = vector.shape_cast %20 : vector<2xf32> to vector<2x1xf32>
    %cst_16 = arith.constant 1.250000e-01 : f32
    %22 = vector.broadcast %cst_16 : f32 to vector<2x1xf32>
    %23 = arith.mulf %21, %22 : vector<2x1xf32>
    %24 = vector.broadcast %19 : vector<2x1xf32> to vector<2x8xf32>
    %25 = arith.addf %24, %18 : vector<2x8xf32>
    %26 = vector.broadcast %23 : vector<2x1xf32> to vector<2x8xf32>
    %27 = arith.subf %25, %26 : vector<2x8xf32>
    %c0_17 = arith.constant 0 : index
    %c0_18 = arith.constant 0 : index
    %28 = vector.load %arg8[%c0_17, %c0_18] : memref<2x8xf32, #tpu.memory_space<vmem>>, vector<2x8xf32>
    tpu.vector_store %arg8[%c0_17, %c0_18], %27 {strides = array<i32>} : memref<2x8xf32, #tpu.memory_space<vmem>>, vector<2x8xf32>,
    return
  }
  func.func @transform_0(%arg0: i32) -> (i32, i32) {
    %c0_i32 = arith.constant 0 : i32
    %c0_i32_0 = arith.constant 0 : i32
    return %arg0, %c0_i32 : i32, i32
  }
  func.func @transform_1(%arg0: i32) -> (i32, i32) {
    %c0_i32 = arith.constant 0 : i32
    %c0_i32_0 = arith.constant 0 : i32
    %c0_i32_1 = arith.constant 0 : i32
    return %c0_i32, %c0_i32_0 : i32, i32
  }
  func.func @transform_2(%arg0: i32) -> (i32, i32) {
    %c0_i32 = arith.constant 0 : i32
    %c0_i32_0 = arith.constant 0 : i32
    %c0_i32_1 = arith.constant 0 : i32
    return %c0_i32, %c0_i32_0 : i32, i32
  }
  func.func @transform_3(%arg0: i32) -> (i32, i32) {
    %c0_i32 = arith.constant 0 : i32
    %c0_i32_0 = arith.constant 0 : i32
    %c0_i32_1 = arith.constant 0 : i32
    return %c0_i32, %c0_i32_0 : i32, i32
  }
  func.func @transform_4(%arg0: i32) -> (i32, i32) {
    %c0_i32 = arith.constant 0 : i32
    %c0_i32_0 = arith.constant 0 : i32
    %c0_i32_1 = arith.constant 0 : i32
    return %c0_i32, %c0_i32_0 : i32, i32
  }
  func.func @transform_5(%arg0: i32) -> (i32, i32) {
    %c0_i32 = arith.constant 0 : i32
    %c0_i32_0 = arith.constant 0 : i32
    %c0_i32_1 = arith.constant 0 : i32
    return %c0_i32, %c0_i32_0 : i32, i32
  }
  func.func @transform_6(%arg0: i32) -> (i32, i32) {
    %c0_i32 = arith.constant 0 : i32
    %c0_i32_0 = arith.constant 0 : i32
    %c0_i32_1 = arith.constant 0 : i32
    return %c0_i32, %c0_i32_0 : i32, i32
  }
  func.func @transform_7(%arg0: i32) -> (i32, i32) {
    %c0_i32 = arith.constant 0 : i32
    %c0_i32_0 = arith.constant 0 : i32
    return %arg0, %c0_i32 : i32, i32
  }
}

</mosaic_0001>

<llo_original>
// kernel: tpu_custom_call.1
$region0: #{tpu_custom_call.1}
  #allocation0 [shape = 'u32[]', space=smem, size = 0x4, offset = 0x4, fixed_abs, tag = 'smem constant byte address 0x4 - core index']
  #allocation1 [shape = 'u32[144,128]{1,0:T(1,128)}', space=vmem, size = 0x12000, scoped, tag = 'internal scratch']
  %s0 = inlined_call_operand.vmem [shape: f32[2,64], index: 0, kind: input, shape index: {}]
  %s1 = inlined_call_operand.vmem [shape: f32[64,64], index: 1, kind: input, shape index: {}]
  %s2 = inlined_call_operand.vmem [shape: f32[1,64], index: 2, kind: input, shape index: {}]
  %s3 = inlined_call_operand.hbm [shape: f32[64,64], index: 3, kind: input, shape index: {}]
  %s4 = inlined_call_operand.vmem [shape: f32[1,64], index: 4, kind: input, shape index: {}]
  %s5 = inlined_call_operand.vmem [shape: f32[64,9], index: 5, kind: input, shape index: {}]
  %s6 = inlined_call_operand.vmem [shape: f32[1,9], index: 6, kind: input, shape index: {}]
  %s7 = inlined_call_operand.hbm [shape: f32[2,8], index: 7, kind: output, shape index: {}]
  %s8 = sld [smem:[#allocation0]]
  $region42: #{tpu_custom_call.1} parent=0
    _
  %s10 = ssub.s32 1, %s8
  %s11 = scalar_select 0, %s10, %s8
  $region1: #{tpu_custom_call.1} parent=0
    #allocation2 [shape = 'u8[32768]{0}', space=vmem, size = 0x8000, scoped, tag = 'input window, operand 3, single buffered']
    #allocation3 [shape = 's32[1]{0}', space=sflag, size = 0x4, scoped, tag = 'scoped memory for tpu_custom_call.1']
    #allocation4 [shape = 's32[1]{0}', space=sflag, size = 0x4, scoped, tag = 'scoped memory for tpu_custom_call.1']
    #allocation5 [shape = 'u8[1024]{0}', space=vmem, size = 0x400, scoped, tag = 'output window, operand 0, single buffered']
    %12 = vsyncpa [#allocation3], 0
    %13 = vsyncpa [#allocation4], 0
    // Predicated region
    $region2: #{tpu_custom_call.1} parent=1 // pred_check
      _
    $region3: #{tpu_custom_call.1} parent=1 // pred_check_branch
      %15 = sbr.rel (0) target = $region5
    $region4: #{tpu_custom_call.1} parent=1 // pred_region
      _
    $region5: #{tpu_custom_call.1} parent=1 // pred_fallthru
      _
    // Predicated region
    $region6: #{tpu_custom_call.1} parent=1 // pred_check
      _
    $region7: #{tpu_custom_call.1} parent=1 // pred_check_branch
      %17 = sbr.rel (0) target = $region9
    $region8: #{tpu_custom_call.1} parent=1 // pred_region
      _
    $region9: #{tpu_custom_call.1} parent=1 // pred_fallthru
      _
    // Predicated region
    $region10: #{tpu_custom_call.1} parent=1 // pred_check
      _
    $region11: #{tpu_custom_call.1} parent=1 // pred_check_branch
      %19 = sbr.rel (0) target = $region13
    $region12: #{tpu_custom_call.1} parent=1 // pred_region
      _
    $region13: #{tpu_custom_call.1} parent=1 // pred_fallthru
      _
    // Predicated region
    $region14: #{tpu_custom_call.1} parent=1 // pred_check
      _
    $region15: #{tpu_custom_call.1} parent=1 // pred_check_branch
      %21 = sbr.rel (0) target = $region17
    $region16: #{tpu_custom_call.1} parent=1 // pred_region
      %s23 = ssub.s32 1024, 1024
      %24 = vsyncadd [#allocation3], %s23
      %s25 = sshll.u32 [#allocation2], 4
      %s26 = int_to_ptr.vmem [resolvable:$true] %s25
      %31 = dma.hbm_to_vmem [thread:$0]  %s3, 1024, %s26, [#allocation3], 128, 128, 8
    $region17: #{tpu_custom_call.1} parent=1 // pred_fallthru
      _
    // Predicated region
    $region18: #{tpu_custom_call.1} parent=1 // pred_check
      _
    $region19: #{tpu_custom_call.1} parent=1 // pred_check_branch
      %33 = sbr.rel (0) target = $region21
    $region20: #{tpu_custom_call.1} parent=1 // pred_region
      _
    $region21: #{tpu_custom_call.1} parent=1 // pred_fallthru
      _
    // Predicated region
    $region22: #{tpu_custom_call.1} parent=1 // pred_check
      _
    $region23: #{tpu_custom_call.1} parent=1 // pred_check_branch
      %35 = sbr.rel (0) target = $region25
    $region24: #{tpu_custom_call.1} parent=1 // pred_region
      _
    $region25: #{tpu_custom_call.1} parent=1 // pred_fallthru
      _
    // Predicated region
    $region26: #{tpu_custom_call.1} parent=1 // pred_check
      _
    $region27: #{tpu_custom_call.1} parent=1 // pred_check_branch
      %37 = sbr.rel (0) target = $region29
    $region28: #{tpu_custom_call.1} parent=1 // pred_region
      _
    $region29: #{tpu_custom_call.1} parent=1 // pred_fallthru
      _
    // Predicated region
    $region30: #{tpu_custom_call.1} parent=1 // pred_check
      _
    $region31: #{tpu_custom_call.1} parent=1 // pred_check_branch
      %39 = sbr.rel (0) target = $region33
    $region32: #{tpu_custom_call.1} parent=1 // pred_region
      %40 = dma.done [#allocation3], 1024
    $region33: #{tpu_custom_call.1} parent=1 // pred_fallthru
      _
    %v41 = vld [vmem:[%s0] sm:$0x3]
    %v42 = vld [vmem:[%s1] sm:$0xff]
    %v43 = vld [vmem:[%s1 + $0x8] sm:$0xff]
    %v44 = vld [vmem:[%s1 + $0x10] sm:$0xff]
    %v45 = vld [vmem:[%s1 + $0x18] sm:$0xff]
    %v46 = vld [vmem:[%s1 + $0x20] sm:$0xff]
    %v47 = vld [vmem:[%s1 + $0x28] sm:$0xff]
    %v48 = vld [vmem:[%s1 + $0x30] sm:$0xff]
    %v49 = vld [vmem:[%s1 + $0x38] sm:$0xff]
    %v50 = vld [vmem:[%s2] sm:$0x1]
    %v52 = vlaneseq
    %v53 = vshrl.u32 %v52, 7
    %v54 = vsub.s32 0, %v53
    %v55 = vrot.slane %v50, %v54
    %vm57 = vcmask 523264
    %v59 = vsel %vm57, %v41, 0
    %61 = vmatprep.subr.mxu0 0.0
    %62 = vmatpush1.msra.mxu0 0.0
    %63 = vmatprep.subr.mxu0 0.0
    %64 = vmatpush1.msra.mxu0 0.0
    %65 = vmatprep.subr.mxu0 0.0
    %66 = vmatpush1.msra.mxu0 0.0
    %67 = vmatprep.subr.mxu0 0.0
    %68 = vmatpush1.msra.mxu0 0.0
    %69 = vmatprep.subr.mxu0 0.0
    %70 = vmatpush1.msra.mxu0 0.0
    %71 = vmatprep.subr.mxu0 0.0
    %72 = vmatpush1.msra.mxu0 0.0
    %73 = vmatprep.subr.mxu0 0.0
    %74 = vmatpush1.msra.mxu0 0.0
    %75 = vmatprep.subr.mxu0 0.0
    %76 = vmatpush1.msra.mxu0 0.0
    %77 = vmatprep.subr.mxu0 0.0
    %78 = vmatpush1.msra.mxu0 %v49
    %79 = vmatprep.subr.mxu0 0.0
    %80 = vmatpush1.msra.mxu0 %v48
    %81 = vmatprep.subr.mxu0 0.0
    %82 = vmatpush1.msra.mxu0 %v47
    %83 = vmatprep.subr.mxu0 0.0
    %84 = vmatpush1.msra.mxu0 %v46
    %85 = vmatprep.subr.mxu0 0.0
    %86 = vmatpush1.msra.mxu0 %v45
    %87 = vmatprep.subr.mxu0 0.0
    %88 = vmatpush1.msra.mxu0 %v44
    %89 = vmatprep.subr.mxu0 0.0
    %90 = vmatpush1.msra.mxu0 %v43
    %91 = vmatprep.subr.mxu0 0.0
    %92 = vmatpush1.msra.mxu0 %v42
    %93 = vmatprep.subr.mxu0 0.0
    %94 = vmatpush2.msra.mxu0 0.0
    %95 = vmatprep.subr.mxu0 0.0
    %96 = vmatpush2.msra.mxu0 0.0
    %97 = vmatprep.subr.mxu0 0.0
    %98 = vmatpush2.msra.mxu0 0.0
    %99 = vmatprep.subr.mxu0 0.0
    %100 = vmatpush2.msra.mxu0 0.0
    %101 = vmatprep.subr.mxu0 0.0
    %102 = vmatpush2.msra.mxu0 0.0
    %103 = vmatprep.subr.mxu0 0.0
    %104 = vmatpush2.msra.mxu0 0.0
    %105 = vmatprep.subr.mxu0 0.0
    %106 = vmatpush2.msra.mxu0 0.0
    %107 = vmatprep.subr.mxu0 0.0
    %108 = vmatpush2.msra.mxu0 0.0
    %109 = vmatprep.subr.mxu0 0.0
    %110 = vmatpush2.msra.mxu0 0.0
    %111 = vmatprep.subr.mxu0 0.0
    %112 = vmatpush2.msra.mxu0 0.0
    %113 = vmatprep.subr.mxu0 0.0
    %114 = vmatpush2.msra.mxu0 0.0
    %115 = vmatprep.subr.mxu0 0.0
    %116 = vmatpush2.msra.mxu0 0.0
    %117 = vmatprep.subr.mxu0 0.0
    %118 = vmatpush2.msra.mxu0 0.0
    %119 = vmatprep.subr.mxu0 0.0
    %120 = vmatpush2.msra.mxu0 0.0
    %121 = vmatprep.subr.mxu0 0.0
    %122 = vmatpush2.msra.mxu0 0.0
    %123 = vmatprep.subr.mxu0 0.0
    %124 = vmatpush2.msra.mxu0 0.0
    %125 = vmatprep.mubr.f32.mxu0 0.0
    %126 = vmatmul.mubr.f32.gmra.mxu0 %v59
    %v127 = vpop.f32.mrf.mxu0
    %v128 = vadd.f32 %v55, %v127
    %v129 = vpop.f32.mrf.mxu0
    %130 = vdwg.mxu0
    %v131 = vtanh.pop %v128
    %v132 = vld [vmem:[#allocation2] sm:$0xff]
    %v133 = vld [vmem:[#allocation2 + $0x8] sm:$0xff]
    %v134 = vld [vmem:[#allocation2 + $0x10] sm:$0xff]
    %v135 = vld [vmem:[#allocation2 + $0x18] sm:$0xff]
    %v136 = vld [vmem:[#allocation2 + $0x20] sm:$0xff]
    %v137 = vld [vmem:[#allocation2 + $0x28] sm:$0xff]
    %v138 = vld [vmem:[#allocation2 + $0x30] sm:$0xff]
    %v139 = vld [vmem:[#allocation2 + $0x38] sm:$0xff]
    %v140 = vld [vmem:[%s4] sm:$0x1]
    %v142 = vlaneseq
    %v143 = vshrl.u32 %v142, 7
    %v144 = vsub.s32 0, %v143
    %v145 = vrot.slane %v140, %v144
    %v148 = vsel %vm57, %v131, 0
    %150 = vmatprep.subr.mxu0 0.0
    %151 = vmatpush1.msra.mxu0 0.0
    %152 = vmatprep.subr.mxu0 0.0
    %153 = vmatpush1.msra.mxu0 0.0
    %154 = vmatprep.subr.mxu0 0.0
    %155 = vmatpush1.msra.mxu0 0.0
    %156 = vmatprep.subr.mxu0 0.0
    %157 = vmatpush1.msra.mxu0 0.0
    %158 = vmatprep.subr.mxu0 0.0
    %159 = vmatpush1.msra.mxu0 0.0
    %160 = vmatprep.subr.mxu0 0.0
    %161 = vmatpush1.msra.mxu0 0.0
    %162 = vmatprep.subr.mxu0 0.0
    %163 = vmatpush1.msra.mxu0 0.0
    %164 = vmatprep.subr.mxu0 0.0
    %165 = vmatpush1.msra.mxu0 0.0
    %166 = vmatprep.subr.mxu0 0.0
    %167 = vmatpush1.msra.mxu0 %v139
    %168 = vmatprep.subr.mxu0 0.0
    %169 = vmatpush1.msra.mxu0 %v138
    %170 = vmatprep.subr.mxu0 0.0
    %171 = vmatpush1.msra.mxu0 %v137
    %172 = vmatprep.subr.mxu0 0.0
    %173 = vmatpush1.msra.mxu0 %v136
    %174 = vmatprep.subr.mxu0 0.0
    %175 = vmatpush1.msra.mxu0 %v135
    %176 = vmatprep.subr.mxu0 0.0
    %177 = vmatpush1.msra.mxu0 %v134
    %178 = vmatprep.subr.mxu0 0.0
    %179 = vmatpush1.msra.mxu0 %v133
    %180 = vmatprep.subr.mxu0 0.0
    %181 = vmatpush1.msra.mxu0 %v132
    %182 = vmatprep.subr.mxu0 0.0
    %183 = vmatpush2.msra.mxu0 0.0
    %184 = vmatprep.subr.mxu0 0.0
    %185 = vmatpush2.msra.mxu0 0.0
    %186 = vmatprep.subr.mxu0 0.0
    %187 = vmatpush2.msra.mxu0 0.0
    %188 = vmatprep.subr.mxu0 0.0
    %189 = vmatpush2.msra.mxu0 0.0
    %190 = vmatprep.subr.mxu0 0.0
    %191 = vmatpush2.msra.mxu0 0.0
    %192 = vmatprep.subr.mxu0 0.0
    %193 = vmatpush2.msra.mxu0 0.0
    %194 = vmatprep.subr.mxu0 0.0
    %195 = vmatpush2.msra.mxu0 0.0
    %196 = vmatprep.subr.mxu0 0.0
    %197 = vmatpush2.msra.mxu0 0.0
    %198 = vmatprep.subr.mxu0 0.0
    %199 = vmatpush2.msra.mxu0 0.0
    %200 = vmatprep.subr.mxu0 0.0
    %201 = vmatpush2.msra.mxu0 0.0
    %202 = vmatprep.subr.mxu0 0.0
    %203 = vmatpush2.msra.mxu0 0.0
    %204 = vmatprep.subr.mxu0 0.0
    %205 = vmatpush2.msra.mxu0 0.0
    %206 = vmatprep.subr.mxu0 0.0
    %207 = vmatpush2.msra.mxu0 0.0
    %208 = vmatprep.subr.mxu0 0.0
    %209 = vmatpush2.msra.mxu0 0.0
    %210 = vmatprep.subr.mxu0 0.0
    %211 = vmatpush2.msra.mxu0 0.0
    %212 = vmatprep.subr.mxu0 0.0
    %213 = vmatpush2.msra.mxu0 0.0
    %214 = vmatprep.mubr.f32.mxu0 0.0
    %215 = vmatmul.mubr.f32.gmra.mxu0 %v148
    %v216 = vpop.f32.mrf.mxu0
    %v217 = vadd.f32 %v145, %v216
    %v218 = vpop.f32.mrf.mxu0
    %219 = vdwg.mxu0
    %v220 = vtanh.pop %v217
    %v221 = vld [vmem:[%s5] sm:$0xff]
    %v222 = vld [vmem:[%s5 + $0x8] sm:$0xff]
    %v223 = vld [vmem:[%s5 + $0x10] sm:$0xff]
    %v224 = vld [vmem:[%s5 + $0x18] sm:$0xff]
    %v225 = vld [vmem:[%s5 + $0x20] sm:$0xff]
    %v226 = vld [vmem:[%s5 + $0x28] sm:$0xff]
    %v227 = vld [vmem:[%s5 + $0x30] sm:$0xff]
    %v228 = vld [vmem:[%s5 + $0x38] sm:$0xff]
    %v229 = vld [vmem:[%s6] sm:$0x1]
    %v231 = vlaneseq
    %v232 = vshrl.u32 %v231, 7
    %v233 = vsub.s32 0, %v232
    %v234 = vrot.slane %v229, %v233
    %v237 = vsel %vm57, %v220, 0
    %239 = vmatprep.subr.mxu0 0.0
    %240 = vmatpush1.msra.mxu0 0.0
    %241 = vmatprep.subr.mxu0 0.0
    %242 = vmatpush1.msra.mxu0 0.0
    %243 = vmatprep.subr.mxu0 0.0
    %244 = vmatpush1.msra.mxu0 0.0
    %245 = vmatprep.subr.mxu0 0.0
    %246 = vmatpush1.msra.mxu0 0.0
    %247 = vmatprep.subr.mxu0 0.0
    %248 = vmatpush1.msra.mxu0 0.0
    %249 = vmatprep.subr.mxu0 0.0
    %250 = vmatpush1.msra.mxu0 0.0
    %251 = vmatprep.subr.mxu0 0.0
    %252 = vmatpush1.msra.mxu0 0.0
    %253 = vmatprep.subr.mxu0 0.0
    %254 = vmatpush1.msra.mxu0 0.0
    %255 = vmatprep.subr.mxu0 0.0
    %256 = vmatpush1.msra.mxu0 %v228
    %257 = vmatprep.subr.mxu0 0.0
    %258 = vmatpush1.msra.mxu0 %v227
    %259 = vmatprep.subr.mxu0 0.0
    %260 = vmatpush1.msra.mxu0 %v226
    %261 = vmatprep.subr.mxu0 0.0
    %262 = vmatpush1.msra.mxu0 %v225
    %263 = vmatprep.subr.mxu0 0.0
    %264 = vmatpush1.msra.mxu0 %v224
    %265 = vmatprep.subr.mxu0 0.0
    %266 = vmatpush1.msra.mxu0 %v223
    %267 = vmatprep.subr.mxu0 0.0
    %268 = vmatpush1.msra.mxu0 %v222
    %269 = vmatprep.subr.mxu0 0.0
    %270 = vmatpush1.msra.mxu0 %v221
    %271 = vmatprep.subr.mxu0 0.0
    %272 = vmatpush2.msra.mxu0 0.0
    %273 = vmatprep.subr.mxu0 0.0
    %274 = vmatpush2.msra.mxu0 0.0
    %275 = vmatprep.subr.mxu0 0.0
    %276 = vmatpush2.msra.mxu0 0.0
    %277 = vmatprep.subr.mxu0 0.0
    %278 = vmatpush2.msra.mxu0 0.0
    %279 = vmatprep.subr.mxu0 0.0
    %280 = vmatpush2.msra.mxu0 0.0
    %281 = vmatprep.subr.mxu0 0.0
    %282 = vmatpush2.msra.mxu0 0.0
    %283 = vmatprep.subr.mxu0 0.0
    %284 = vmatpush2.msra.mxu0 0.0
    %285 = vmatprep.subr.mxu0 0.0
    %286 = vmatpush2.msra.mxu0 0.0
    %287 = vmatprep.subr.mxu0 0.0
    %288 = vmatpush2.msra.mxu0 0.0
    %289 = vmatprep.subr.mxu0 0.0
    %290 = vmatpush2.msra.mxu0 0.0
    %291 = vmatprep.subr.mxu0 0.0
    %292 = vmatpush2.msra.mxu0 0.0
    %293 = vmatprep.subr.mxu0 0.0
    %294 = vmatpush2.msra.mxu0 0.0
    %295 = vmatprep.subr.mxu0 0.0
    %296 = vmatpush2.msra.mxu0 0.0
    %297 = vmatprep.subr.mxu0 0.0
    %298 = vmatpush2.msra.mxu0 0.0
    %299 = vmatprep.subr.mxu0 0.0
    %300 = vmatpush2.msra.mxu0 0.0
    %301 = vmatprep.subr.mxu0 0.0
    %302 = vmatpush2.msra.mxu0 0.0
    %303 = vmatprep.mubr.f32.mxu0 0.0
    %304 = vmatmul.mubr.f32.gmra.mxu0 %v237
    %v305 = vpop.f32.mrf.mxu0
    %v306 = vadd.f32 %v234, %v305
    %v307 = vpop.f32.mrf.mxu0
    %308 = vdwg.mxu0
    %vm309 = vcmask 58368
    %v310 = vsel %vm309, %v306, 0.0
    %311 = vadd.xlane.f32.xlu0 %v310
    %v312 = vpop.xlane.xlu0 %311
    %v313 = vmul.f32 %v312, 0.125
    %315 = vset.pattern.permute.xlu0 8
    %316 = vperm.xlu0 %315, %v306
    %v317 = vpop.permute.xlu0 %316
    %v319 = vadd.f32 %v317, %v306
    %v320 = vsub.f32 %v319, %v313
    %321 = vst.msk [vmem:[#allocation5] sm:$0x3] %vm309, %v320
    // Predicated region
    $region34: #{tpu_custom_call.1} parent=1 // pred_check
      _
    $region35: #{tpu_custom_call.1} parent=1 // pred_check_branch
      %323 = sbr.rel (0) target = $region37
    $region36: #{tpu_custom_call.1} parent=1 // pred_region
      %s325 = ssub.s32 32, 32
      %326 = vsyncadd [#allocation4], %s325
      %s328 = sshll.u32 [#allocation5], 4
      %s329 = int_to_ptr.vmem [resolvable:$true] %s328
      %331 = dma.vmem_to_hbm [thread:$0]  %s329, 32, %s7, [#allocation4]
    $region37: #{tpu_custom_call.1} parent=1 // pred_fallthru
      _
    // Predicated region
    $region38: #{tpu_custom_call.1} parent=1 // pred_check
      _
    $region39: #{tpu_custom_call.1} parent=1 // pred_check_branch
      %333 = sbr.rel (0) target = $region41
    $region40: #{tpu_custom_call.1} parent=1 // pred_region
      %334 = dma.done [#allocation4], 32
    $region41: #{tpu_custom_call.1} parent=1 // pred_fallthru
      _
    %335 = vsyncpa [#allocation3], 1
    %336 = vsyncpa [#allocation4], 1

</llo_original>
